<compile_context>
chip_gen: v5e
topology: v5e:2x2
jax: 0.10.0
libtpu: 0.0.40
codegen_flags: <defaults>
</compile_context>

<pallas_src>
import functools

import jax
import jax.numpy as jnp
from jax.experimental import pallas as pl
from jax.experimental.pallas import tpu as pltpu

LANES = 128          # TPU vreg lane width; packed buffers are lane-dense.
_NEG_BIG = -1e30     # mask for padded action lanes (exp underflows -> 0)


def _round_up(n, m):
    return (n + m - 1) // m * m


# ---------------------------------------------------------------------------
# Parameter packing: one lane-dense f32 slab holding w1, b1 and w2 (with b2
# folded in).  Row layout (all offsets sublane-aligned to 8):
#   [0, s_size)              : w1   (lanes [0, h_size); lane h_size is 0)
#   [off_b1]                 : b1   (lanes [0, h_size)); lane h_size = 1.0 so
#                              h[:, h_size] == relu(0 + 1) == 1 for every row
#   [off_w2, off_w2 + 128)   : w2   rows [0, h_size) lanes [0, a_size);
#                              row h_size = b2 row (bias rides the matmul via
#                              the constant-1 hidden lane; padded action lanes
#                              carry the -1e30 mask)
# For a_size == 2 the fc2 weights/bias are antisymmetrized (col0-col1,
# col1-col0) so the kernel's "logits" are already the pairwise differences and
# softmax reduces to an elementwise sigmoid (no cross-lane reductions).
# ---------------------------------------------------------------------------
def pack_params(w1, b1, w2, b2):
    s_size, h_size = w1.shape
    h2, a_size = w2.shape
    assert h2 == h_size and h_size < LANES and a_size <= LANES

    off_b1 = _round_up(s_size, 8)
    off_w2 = off_b1 + 8
    rows = off_w2 + LANES
    a_cols = _round_up(a_size, 8)

    two_action = a_size == 2
    if two_action:
        A = jnp.array([[1.0, -1.0], [-1.0, 1.0]], jnp.float32)
        w2_eff = (w2.astype(jnp.float32) @ A)
        b2_eff = (b2.reshape(1, a_size).astype(jnp.float32) @ A).reshape(a_size)
    else:
        w2_eff = w2.astype(jnp.float32)
        b2_eff = b2.reshape(a_size).astype(jnp.float32)

    slab = jnp.zeros((rows, LANES), jnp.float32)
    # fc1 weights; lane h_size left at 0 so the constant-1 lane is bias-only.
    slab = slab.at[0:s_size, 0:h_size].set(w1.astype(jnp.float32))
    # fc1 bias row, plus the constant-1 generator lane for the b2 fold.
    b1_row = jnp.zeros((LANES,), jnp.float32)
    b1_row = b1_row.at[0:h_size].set(b1.astype(jnp.float32)).at[h_size].set(1.0)
    slab = slab.at[off_b1, :].set(b1_row)
    # fc2 block with b2 folded into row h_size (multiplied by the constant-1
    # hidden lane); masked action lanes get -1e30 so exp underflows to 0.
    w2_blk = jnp.zeros((LANES, LANES), jnp.float32)
    w2_blk = w2_blk.at[0:h_size, 0:a_size].set(w2_eff)
    b2_row = jnp.full((LANES,), _NEG_BIG, jnp.float32).at[0:a_size].set(b2_eff)
    w2_blk = w2_blk.at[h_size, :].set(b2_row)
    slab = slab.at[off_w2:off_w2 + LANES, :].set(w2_blk)

    meta = dict(s_size=s_size, h_size=h_size, a_size=a_size, a_cols=a_cols,
                off_b1=off_b1, off_w2=off_w2, rows=rows, two_action=two_action)
    return slab, meta


def _mlp_logits(x_ref, p_ref, *, s_size, off_b1, off_w2):
    """Shared fc1 -> ReLU -> fc2 body.  Returns lane-dense (tb, 128) logits."""
    x = x_ref[...]                                   # (tb, s_size) f32
    w1 = p_ref[0:s_size, :]                          # (s_size, 128)
    b1 = p_ref[off_b1:off_b1 + 1, :]                 # (1, 128)
    w2 = p_ref[off_w2:off_w2 + LANES, :]             # (128, 128), b2 folded in
    h = jnp.dot(x, w1, preferred_element_type=jnp.float32) + b1
    h = jnp.maximum(h, 0.0)                          # lane h_size == 1 (bias)
    return jnp.dot(h, w2, preferred_element_type=jnp.float32)


def _policy_probs_kernel(x_ref, p_ref, o_ref, *, s_size, off_b1, off_w2,
                         a_cols, two_action):
    logits = _mlp_logits(x_ref, p_ref, s_size=s_size, off_b1=off_b1,
                         off_w2=off_w2)
    if two_action:
        # logits[:, 0] = l0 - l1, logits[:, 1] = l1 - l0 (folded at pack time):
        # softmax == elementwise sigmoid.  Stable form: exp argument <= 0, and
        # the normalization uses an EXACT divide so each row sums to 1 up to
        # float rounding (the approx reciprocal was the cause of the previous
        # sum-to-1 failure).  Masked lanes (-1e30) -> 0.
        z = jnp.exp(-jnp.abs(logits))                # in (0, 1]
        inv = 1.0 / (1.0 + z)
        probs = jnp.where(logits >= 0.0, inv, z * inv)
    else:
        # Generic numerically-stable softmax over the action lanes (exact divide).
        m = jnp.max(logits, axis=-1, keepdims=True)
        e = jnp.exp(logits - m)                      # masked lanes -> 0
        probs = e / jnp.sum(e, axis=-1, keepdims=True)
    o_ref[...] = probs[:, 0:a_cols]                  # small (tb, a_cols) store


def _policy_act_kernel(x_ref, p_ref, u_ref, a_ref, lp_ref, *, s_size, off_b1,
                       off_w2):
    """Fused forward + Categorical sample + log-prob (two-action only)."""
    logits = _mlp_logits(x_ref, p_ref, s_size=s_size, off_b1=off_b1,
                         off_w2=off_w2)
    d = logits[:, 0:1]                               # (tb, 1): l0 - l1
    z = jnp.exp(-jnp.abs(d))
    inv = 1.0 / (1.0 + z)
    p0 = jnp.where(d >= 0.0, inv, z * inv)           # P(action == 0)
    u = u_ref[...]                                   # (tb, 1) uniforms
    take1 = u >= p0                                  # inverse-CDF sampling
    a_ref[...] = take1.astype(jnp.int32)
    p_sel = jnp.where(take1, 1.0 - p0, p0)
    lp_ref[...] = jnp.log(jnp.maximum(p_sel, 1e-37))


def _choose_batch_tile(batch):
    """(batch_tile, padded_batch).  Single grid step for small batches; for
    large batches ~1K-row tiles with >= 2 steps so v7x's two TensorCores both
    get work (v5e/v6e just see fewer, larger steps)."""
    b_pad = _round_up(batch, 8)
    if b_pad <= 512:
        return b_pad, b_pad
    tb = min(1024, _round_up((b_pad + 1) // 2, 8))
    return tb, _round_up(b_pad, tb)


def _common_specs(tb, s_size, rows):
    return [
        pl.BlockSpec((tb, s_size), lambda i: (i, 0)),
        # Constant index_map: the packed parameter slab is DMA'd once and stays
        # resident in VMEM across all batch-grid steps.
        pl.BlockSpec((rows, LANES), lambda i: (0, 0)),
    ]


def policy_forward(x, slab, meta):
    """x: (B, s_size) f32 -> action probabilities (B, a_size) f32."""
    B, s_size = x.shape
    assert s_size == meta["s_size"]
    a_size, a_cols, rows = meta["a_size"], meta["a_cols"], meta["rows"]

    tb, b_pad = _choose_batch_tile(B)
    if b_pad != B:
        x = jnp.pad(x, ((0, b_pad - B), (0, 0)))

    kernel = functools.partial(
        _policy_probs_kernel, s_size=s_size, off_b1=meta["off_b1"],
        off_w2=meta["off_w2"], a_cols=a_cols, two_action=meta["two_action"])
    out = pl.pallas_call(
        kernel,
        out_shape=jax.ShapeDtypeStruct((b_pad, a_cols), jnp.float32),
        grid=(b_pad // tb,),
        in_specs=_common_specs(tb, s_size, rows),
        out_specs=pl.BlockSpec((tb, a_cols), lambda i: (i, 0)),
        compiler_params=pltpu.CompilerParams(
            dimension_semantics=("parallel",)),
    )(x.astype(jnp.float32), slab)
    return out[:B, :a_size]


def policy_act(x, u, slab, meta):
    """Fused act(): x (B, s_size), u (B, 1) uniforms -> (action (B,) int32,
    log_prob (B,) f32).  Two-action (CartPole) only."""
    assert meta["two_action"], "fused sampling implemented for a_size == 2"
    B, s_size = x.shape
    assert s_size == meta["s_size"]
    rows = meta["rows"]

    tb, b_pad = _choose_batch_tile(B)
    if b_pad != B:
        x = jnp.pad(x, ((0, b_pad - B), (0, 0)))
        u = jnp.pad(u, ((0, b_pad - B), (0, 0)), constant_values=0.5)

    kernel = functools.partial(
        _policy_act_kernel, s_size=s_size, off_b1=meta["off_b1"],
        off_w2=meta["off_w2"])
    actions, logp = pl.pallas_call(
        kernel,
        out_shape=(jax.ShapeDtypeStruct((b_pad, 1), jnp.int32),
                   jax.ShapeDtypeStruct((b_pad, 1), jnp.float32)),
        grid=(b_pad // tb,),
        in_specs=_common_specs(tb, s_size, rows)
                 + [pl.BlockSpec((tb, 1), lambda i: (i, 0))],
        out_specs=(pl.BlockSpec((tb, 1), lambda i: (i, 0)),
                   pl.BlockSpec((tb, 1), lambda i: (i, 0))),
        compiler_params=pltpu.CompilerParams(
            dimension_semantics=("parallel",)),
    )(x.astype(jnp.float32), slab, u.astype(jnp.float32))
    return actions[:B, 0], logp[:B, 0]


def init_params(key, s_size, h_size, a_size):
    """Deterministic init mimicking nn.Linear's uniform(-1/sqrt(fan_in), ...)."""
    k1, k2, k3, k4 = jax.random.split(key, 4)
    bound1 = 1.0 / jnp.sqrt(s_size)
    bound2 = 1.0 / jnp.sqrt(h_size)
    w1 = jax.random.uniform(k1, (s_size, h_size), jnp.float32, -bound1, bound1)
    b1 = jax.random.uniform(k2, (h_size,), jnp.float32, -bound1, bound1)
    w2 = jax.random.uniform(k3, (h_size, a_size), jnp.float32, -bound2, bound2)
    b2 = jax.random.uniform(k4, (a_size,), jnp.float32, -bound2, bound2)
    return w1, b1, w2, b2


def reference_forward(x, w1, b1, w2, b2):
    h = jnp.maximum(x @ w1 + b1, 0.0)
    return jax.nn.softmax(h @ w2 + b2, axis=1)


if __name__ == "__main__":
    # CartPole-v1: s_size = 4 observations, a_size = 2 actions; h_size = 16.
    B, s_size, h_size, a_size = 8, 4, 16, 2

    key = jax.random.PRNGKey(0)
    key_x, key_p, key_u = jax.random.split(key, 3)
    x = jax.random.normal(key_x, (B, s_size), dtype=jnp.float32)
    w1, b1, w2, b2 = init_params(key_p, s_size, h_size, a_size)

    slab, meta = pack_params(w1, b1, w2, b2)

    # --- forward (softmax probabilities) -----------------------------------
    probs = jax.block_until_ready(policy_forward(x, slab, meta))
    ref = reference_forward(x, w1, b1, w2, b2)
    assert probs.shape == (B, a_size)
    assert jnp.allclose(probs, ref, atol=1e-3, rtol=1e-3)
    assert jnp.allclose(jnp.sum(probs, axis=1), 1.0, atol=1e-3)

    # --- fused act (sample + log-prob) --------------------------------------
    u = jax.random.uniform(key_u, (B, 1), dtype=jnp.float32)
    actions, logp = policy_act(x, u, slab, meta)
    actions = jax.block_until_ready(actions)
    logp = jax.block_until_ready(logp)
    assert actions.shape == (B,) and logp.shape == (B,)
    assert bool(jnp.all((actions == 0) | (actions == 1)))
    # The log-prob of the chosen action must match the reference probability.
    chosen = ref[jnp.arange(B), actions]
    assert jnp.allclose(jnp.exp(logp), chosen, atol=1e-3, rtol=1e-3)
    # Away from the decision boundary the sampled action must agree with the
    # reference inverse-CDF sample.
    clear = jnp.abs(u[:, 0] - ref[:, 0]) > 1e-3
    ref_act = (u[:, 0] >= ref[:, 0]).astype(jnp.int32)
    assert bool(jnp.all(jnp.where(clear, actions == ref_act, True)))

    print("KERNEL_OK")
</pallas_src>

<mosaic_0001>
module attributes {stable_mosaic.version = 11 : i64} {
  func.func @_policy_probs_kernel(%arg0: i32, %arg1: memref<8x4xf32, #tpu.memory_space<vmem>>, %arg2: memref<144x128xf32, #tpu.memory_space<vmem>>, %arg3: memref<8x8xf32, #tpu.memory_space<vmem>>) attributes {dimension_semantics = [#tpu.dimension_semantics<parallel>], iteration_bounds = array<i64: 1>, scalar_prefetch = 0 : i64, scratch_operands = 0 : i64, tpu.core_type = #tpu.core_type<tc>, window_params = [{transform_indices = @transform_0, window_bounds = array<i64: 8, 4>}, {pipeline_mode = #tpu.pipeline_mode<synchronous>, transform_indices = @transform_1, window_bounds = array<i64: 144, 128>}, {transform_indices = @transform_2, window_bounds = array<i64: 8, 8>}]} {
    %c0 = arith.constant 0 : index
    %c0_0 = arith.constant 0 : index
    %0 = vector.load %arg1[%c0, %c0_0] : memref<8x4xf32, #tpu.memory_space<vmem>>, vector<8x4xf32>
    %c0_1 = arith.constant 0 : index
    %c0_2 = arith.constant 0 : index
    %1 = vector.load %arg2[%c0_1, %c0_2] : memref<144x128xf32, #tpu.memory_space<vmem>>, vector<4x128xf32>
    %c8 = arith.constant 8 : index
    %c0_3 = arith.constant 0 : index
    %2 = vector.load %arg2[%c8, %c0_3] : memref<144x128xf32, #tpu.memory_space<vmem>>, vector<1x128xf32>
    %c16 = arith.constant 16 : index
    %c0_4 = arith.constant 0 : index
    %3 = vector.load %arg2[%c16, %c0_4] : memref<144x128xf32, #tpu.memory_space<vmem>>, vector<128x128xf32>
    %cst = arith.constant dense<0.000000e+00> : vector<8x128xf32>
    %4 = tpu.matmul %0, %1, %cst {dimension_numbers = #tpu.dot_dimension_numbers<[1], [0], [0], [1], [0, 0, 1, 1], [], []>} : vector<8x4xf32>, vector<4x128xf32>, vector<8x128xf32> -> vector<8x128xf32>
    %5 = vector.broadcast %2 : vector<1x128xf32> to vector<8x128xf32>
    %6 = arith.addf %4, %5 : vector<8x128xf32>
    %cst_5 = arith.constant 0.000000e+00 : f32
    %7 = vector.broadcast %cst_5 : f32 to vector<8x128xf32>
    %8 = arith.maximumf %6, %7 : vector<8x128xf32>
    %cst_6 = arith.constant dense<0.000000e+00> : vector<8x128xf32>
    %9 = tpu.matmul %8, %3, %cst_6 {dimension_numbers = #tpu.dot_dimension_numbers<[1], [0], [0], [1], [0, 0, 1, 1], [], []>} : vector<8x128xf32>, vector<128x128xf32>, vector<8x128xf32> -> vector<8x128xf32>
    %10 = math.absf %9 : vector<8x128xf32>
    %cst_7 = arith.constant 0.000000e+00 : f32
    %11 = vector.broadcast %cst_7 : f32 to vector<8x128xf32>
    %12 = arith.subf %11, %10 : vector<8x128xf32>
    %13 = math.exp %12 : vector<8x128xf32>
    %cst_8 = arith.constant 1.000000e+00 : f32
    %14 = vector.broadcast %cst_8 : f32 to vector<8x128xf32>
    %15 = arith.addf %14, %13 : vector<8x128xf32>
    %cst_9 = arith.constant 1.000000e+00 : f32
    %16 = vector.broadcast %cst_9 : f32 to vector<8x128xf32>
    %17 = arith.divf %16, %15 : vector<8x128xf32>
    %cst_10 = arith.constant 0.000000e+00 : f32
    %18 = vector.broadcast %cst_10 : f32 to vector<8x128xf32>
    %19 = arith.cmpf oge, %9, %18 : vector<8x128xf32>
    %20 = arith.mulf %13, %17 : vector<8x128xf32>
    %21 = arith.select %19, %17, %20 : vector<8x128xi1>, vector<8x128xf32>
    %22 = vector.extract_strided_slice %21 {offsets = [0, 0], sizes = [8, 8], strides = [1, 1]} : vector<8x128xf32> to vector<8x8xf32>
    %c0_11 = arith.constant 0 : index
    %c0_12 = arith.constant 0 : index
    %23 = vector.load %arg3[%c0_11, %c0_12] : memref<8x8xf32, #tpu.memory_space<vmem>>, vector<8x8xf32>
    tpu.vector_store %arg3[%c0_11, %c0_12], %22 {strides = array<i32>} : memref<8x8xf32, #tpu.memory_space<vmem>>, vector<8x8xf32>,
    return
  }
  func.func @transform_0(%arg0: i32) -> (i32, i32) {
    %c0_i32 = arith.constant 0 : i32
    %c0_i32_0 = arith.constant 0 : i32
    return %arg0, %c0_i32 : i32, i32
  }
  func.func @transform_1(%arg0: i32) -> (i32, i32) {
    %c0_i32 = arith.constant 0 : i32
    %c0_i32_0 = arith.constant 0 : i32
    %c0_i32_1 = arith.constant 0 : i32
    return %c0_i32, %c0_i32_0 : i32, i32
  }
  func.func @transform_2(%arg0: i32) -> (i32, i32) {
    %c0_i32 = arith.constant 0 : i32
    %c0_i32_0 = arith.constant 0 : i32
    return %arg0, %c0_i32 : i32, i32
  }
}

</mosaic_0001>

<llo_original>
// kernel: tpu_custom_call.1
$region0: #{tpu_custom_call.1}
  #allocation0 [shape = 'u32[]', space=smem, size = 0x4, offset = 0x4, fixed_abs, tag = 'smem constant byte address 0x4 - core index']
  #allocation1 [shape = 'u32[72,128]{1,0:T(1,128)}', space=vmem, size = 0x9000, scoped, tag = 'internal scratch']
  %s0 = inlined_call_operand.vmem [shape: f32[8,4], index: 0, kind: input, shape index: {}]
  %s1 = inlined_call_operand.hbm [shape: f32[144,128], index: 1, kind: input, shape index: {}]
  %s2 = inlined_call_operand.hbm [shape: f32[8,8], index: 2, kind: output, shape index: {}]
  %s3 = sld [smem:[#allocation0]]
  $region22: #{tpu_custom_call.1} parent=0
    _
  %s5 = ssub.s32 1, %s3
  %s6 = scalar_select 0, %s5, %s3
  $region1: #{tpu_custom_call.1} parent=0
    #allocation2 [shape = 'u8[73728]{0}', space=vmem, size = 0x12000, scoped, tag = 'input window, operand 1, single buffered']
    #allocation3 [shape = 's32[1]{0}', space=sflag, size = 0x4, scoped, tag = 'scoped memory for tpu_custom_call.1']
    #allocation4 [shape = 's32[1]{0}', space=sflag, size = 0x4, scoped, tag = 'scoped memory for tpu_custom_call.1']
    #allocation5 [shape = 'u8[4096]{0}', space=vmem, size = 0x1000, scoped, tag = 'output window, operand 0, single buffered']
    %7 = vsyncpa [#allocation3], 0
    %8 = vsyncpa [#allocation4], 0
    // Predicated region
    $region2: #{tpu_custom_call.1} parent=1 // pred_check
      _
    $region3: #{tpu_custom_call.1} parent=1 // pred_check_branch
      %10 = sbr.rel (0) target = $region5
    $region4: #{tpu_custom_call.1} parent=1 // pred_region
      _
    $region5: #{tpu_custom_call.1} parent=1 // pred_fallthru
      _
    // Predicated region
    $region6: #{tpu_custom_call.1} parent=1 // pred_check
      _
    $region7: #{tpu_custom_call.1} parent=1 // pred_check_branch
      %12 = sbr.rel (0) target = $region9
    $region8: #{tpu_custom_call.1} parent=1 // pred_region
      %14 = vsyncadd [#allocation3], 0
      %s15 = sshll.u32 %s1, 4
      %s16 = int_to_ptr.hbm [resolvable:$true] %s15
      %s17 = sshll.u32 [#allocation2], 4
      %s18 = int_to_ptr.vmem [resolvable:$true] %s17
      %23 = dma.hbm_to_vmem [thread:$0]  %s16, 2304, %s18, [#allocation3], 128, 128, 8
    $region9: #{tpu_custom_call.1} parent=1 // pred_fallthru
      _
    // Predicated region
    $region10: #{tpu_custom_call.1} parent=1 // pred_check
      _
    $region11: #{tpu_custom_call.1} parent=1 // pred_check_branch
      %25 = sbr.rel (0) target = $region13
    $region12: #{tpu_custom_call.1} parent=1 // pred_region
      %27 = dma.done [#allocation3], 2304
    $region13: #{tpu_custom_call.1} parent=1 // pred_fallthru
      _
    %v28 = vld [vmem:[%s0] sm:$0xff]
    %v29 = vld [vmem:[#allocation2] sm:$0xf]
    %v30 = vld [vmem:[#allocation2 + $0x8] sm:$0x1]
    %v31 = vld [vmem:[#allocation2 + $0x10] sm:$0xff]
    %v32 = vld [vmem:[#allocation2 + $0x18] sm:$0xff]
    %v33 = vld [vmem:[#allocation2 + $0x20] sm:$0xff]
    %v34 = vld [vmem:[#allocation2 + $0x28] sm:$0xff]
    %v35 = vld [vmem:[#allocation2 + $0x30] sm:$0xff]
    %v36 = vld [vmem:[#allocation2 + $0x38] sm:$0xff]
    %v37 = vld [vmem:[#allocation2 + $0x40] sm:$0xff]
    %v38 = vld [vmem:[#allocation2 + $0x48] sm:$0xff]
    %v39 = vld [vmem:[#allocation2 + $0x50] sm:$0xff]
    %v40 = vld [vmem:[#allocation2 + $0x58] sm:$0xff]
    %v41 = vld [vmem:[#allocation2 + $0x60] sm:$0xff]
    %v42 = vld [vmem:[#allocation2 + $0x68] sm:$0xff]
    %v43 = vld [vmem:[#allocation2 + $0x70] sm:$0xff]
    %v44 = vld [vmem:[#allocation2 + $0x78] sm:$0xff]
    %v45 = vld [vmem:[#allocation2 + $0x80] sm:$0xff]
    %v46 = vld [vmem:[#allocation2 + $0x88] sm:$0xff]
    %v47 = vperm.slane %v30, 0
    %vm48 = vcmask 31744
    %v50 = vsel %vm48, %v28, 0
    %vm52 = vcmask 1043456
    %v54 = vsel %vm52, %v29, 0
    %56 = vmatpush.msra.mxu0 0.0
    %57 = vmatpush.msra.mxu0 0.0
    %58 = vmatpush.msra.mxu0 0.0
    %59 = vmatpush.msra.mxu0 0.0
    %60 = vmatpush.msra.mxu0 0.0
    %61 = vmatpush.msra.mxu0 0.0
    %62 = vmatpush.msra.mxu0 0.0
    %63 = vmatpush.msra.mxu0 0.0
    %64 = vmatpush.msra.mxu0 0.0
    %65 = vmatpush.msra.mxu0 0.0
    %66 = vmatpush.msra.mxu0 0.0
    %67 = vmatpush.msra.mxu0 0.0
    %68 = vmatpush.msra.mxu0 0.0
    %69 = vmatpush.msra.mxu0 0.0
    %70 = vmatpush.msra.mxu0 0.0
    %71 = vmatpush.msra.mxu0 %v54
    %72 = vmatmul.f32.gmra.mxu0 %v50
    %v73 = vpop.f32.mrf.mxu0
    %v74 = vadd.f32 %v47, %v73
    %75 = vdwg.mxu0
    %v76 = vmax.f32 %v74, 0.0
    %77 = vmatpush.msra.mxu0 %v46
    %78 = vmatpush.msra.mxu0 %v45
    %79 = vmatpush.msra.mxu0 %v44
    %80 = vmatpush.msra.mxu0 %v43
    %81 = vmatpush.msra.mxu0 %v42
    %82 = vmatpush.msra.mxu0 %v41
    %83 = vmatpush.msra.mxu0 %v40
    %84 = vmatpush.msra.mxu0 %v39
    %85 = vmatpush.msra.mxu0 %v38
    %86 = vmatpush.msra.mxu0 %v37
    %87 = vmatpush.msra.mxu0 %v36
    %88 = vmatpush.msra.mxu0 %v35
    %89 = vmatpush.msra.mxu0 %v34
    %90 = vmatpush.msra.mxu0 %v33
    %91 = vmatpush.msra.mxu0 %v32
    %92 = vmatpush.msra.mxu0 %v31
    %93 = vmatmul.f32.gmra.mxu0 %v76
    %v94 = vpop.f32.mrf.mxu0
    %v95 = vadd.f32 0.0, %v94
    %96 = vdwg.mxu0
    %v97 = vand.u32 2147483647, %v95
    %v98 = vsub.f32 0.0, %v97
    %v99 = vmul.f32 %v98, 1.442695
    %v100 = vpow.pop %v99
    %v101 = vadd.f32 %v100, 1.0
    %v102 = vrcp.pop %v101
    %v103 = vmul.f32 %v101, %v102
    %v104 = vsub.f32 1.0, %v103
    %v105 = vmul.f32 %v102, %v104
    %v106 = vadd.f32 %v102, %v105
    %vm107 = vweird.f32 %v101
    %vm108 = vweird.f32 %v102
    %vm109 = vmor %vm107, %vm108
    %v110 = vsel %vm109, %v102, %v106
    %v111 = vand.u32 2147483647, %v101
    %vm112 = vcmp.eq.f32.partialorder %v111, 8.507059e+37
    %v113 = vand.u32 %v101, 2147483648
    %v114 = vor.u32 1.1754944e-38, %v113
    %v115 = vsel %vm112, %v114, %v110
    %v116 = vmul.f32 1.0, %v115
    %vm117 = vcmp.ge.f32.partialorder %v95, 0.0
    %v118 = vmul.f32 %v100, %v116
    %v119 = vsel %vm117, %v116, %v118
    %vm120 = vcmask 64512
    %121 = vst.msk [vmem:[#allocation5] sm:$0xff] %vm120, %v119
    // Predicated region
    $region14: #{tpu_custom_call.1} parent=1 // pred_check
      _
    $region15: #{tpu_custom_call.1} parent=1 // pred_check_branch
      %123 = sbr.rel (0) target = $region17
    $region16: #{tpu_custom_call.1} parent=1 // pred_region
      %125 = vsyncadd [#allocation4], 0
      %s127 = sshll.u32 [#allocation5], 4
      %s128 = int_to_ptr.vmem [resolvable:$true] %s127
      %s129 = sshll.u32 %s2, 4
      %s130 = int_to_ptr.hbm [resolvable:$true] %s129
      %132 = dma.vmem_to_hbm [thread:$0]  %s128, 128, %s130, [#allocation4]
    $region17: #{tpu_custom_call.1} parent=1 // pred_fallthru
      _
    // Predicated region
    $region18: #{tpu_custom_call.1} parent=1 // pred_check
      _
    $region19: #{tpu_custom_call.1} parent=1 // pred_check_branch
      %134 = sbr.rel (0) target = $region21
    $region20: #{tpu_custom_call.1} parent=1 // pred_region
      %136 = dma.done [#allocation4], 128
    $region21: #{tpu_custom_call.1} parent=1 // pred_fallthru
      _
    %137 = vsyncpa [#allocation3], 1
    %138 = vsyncpa [#allocation4], 1

</llo_original>
